<compile_context>
chip_gen: v6e
topology: v6e:2x2x1
jax: 0.10.0
libtpu: 0.0.40
codegen_flags: <defaults>
</compile_context>

<pallas_src>
import functools

import jax
import jax.numpy as jnp
from jax.experimental import pallas as pl
from jax.experimental.pallas import tpu as pltpu

_VMEM = pl.BlockSpec(memory_space=pltpu.MemorySpace.VMEM)


# ----------------------------- fused Pallas kernel ---------------------------

def _dgcl_fused_kernel(adj1_ref, adj2_ref, x_ref, gnn_w_ref, w1_ref, w2_ref,
                       cw_ref, bias_ref, pos_ref,
                       res_ref, loss_ref, *, n, h, ph, p, tau):
    f32 = jnp.float32
    bf16 = jnp.bfloat16
    inv_n = 1.0 / n

    # packed bias rows (static sublane/lane slices, zero DMA cost beyond one tile)
    gnn_b = bias_ref[0:1, 0:h]
    b1 = bias_ref[1:2, 0:ph]
    bn_g = bias_ref[2:3, 0:ph]
    bn_b = bias_ref[3:4, 0:ph]
    b2 = bias_ref[4:5, 0:p]
    cb = bias_ref[5:6, 0:2]

    adj1 = adj1_ref[...]          # bf16, 0/1 exact
    adj2 = adj2_ref[...]

    # ---- GCN encoder (enc = A @ (X @ W) + b), both views batched on rows --------
    xw = jnp.dot(x_ref[...], gnn_w_ref[...], preferred_element_type=f32)   # (2N, H)
    xw_bf = xw.astype(bf16)
    enc1 = jnp.dot(adj1, xw_bf[0:n, :], preferred_element_type=f32) + gnn_b
    enc2 = jnp.dot(adj2, xw_bf[n:, :], preferred_element_type=f32) + gnn_b
    enc = jnp.concatenate([enc1, enc2], axis=0)                            # (2N, H)
    enc_bf = enc.astype(bf16)

    # ---- MLP projector: Linear -> BatchNorm1d (per-view batch stats) -> ELU -> Linear
    hid = jnp.dot(enc_bf, w1_ref[...], preferred_element_type=f32) + b1    # (2N, PH)

    def _bn_elu(hv):
        mean = jnp.sum(hv, axis=0, keepdims=True) * inv_n
        meansq = jnp.sum(hv * hv, axis=0, keepdims=True) * inv_n
        var = jnp.maximum(meansq - mean * mean, 0.0)       # biased var, one pass
        hn = (hv - mean) * jax.lax.rsqrt(var + 1e-5)
        hn = hn * bn_g + bn_b
        return jnp.where(hn > 0, hn, jnp.exp(hn) - 1.0)    # ELU(alpha=1)

    act = jnp.concatenate([_bn_elu(hid[0:n, :]), _bn_elu(hid[n:, :])], axis=0)
    proj = (jnp.dot(act.astype(bf16), w2_ref[...], preferred_element_type=f32)
            + b2)                                                           # (2N, P)

    # ---- contrastive loss: ONE score matmul, both directions from m12 -----------
    z1 = proj[0:n, :]
    z2 = proj[n:, :]
    z1 = z1 * jax.lax.rsqrt(jnp.maximum(jnp.sum(z1 * z1, axis=1, keepdims=True), 1e-24))
    z2 = z2 * jax.lax.rsqrt(jnp.maximum(jnp.sum(z2 * z2, axis=1, keepdims=True), 1e-24))
    s12 = jax.lax.dot_general(z1.astype(bf16), z2.astype(bf16),
                              (((1,), (1,)), ((), ())),
                              preferred_element_type=f32)                   # z1 @ z2.T
    # rows are L2-normalized so |s| <= 1 and exp(s/tau) cannot overflow for sane tau
    m12 = jnp.exp(s12 * (1.0 / tau))
    pos = pos_ref[...]
    # direction 1: rows of m12 with pos
    per1 = (jnp.log(jnp.sum(m12, axis=1, keepdims=True))
            - jnp.log(jnp.sum(m12 * pos, axis=1, keepdims=True)))           # (N, 1)
    # direction 2: m21 = m12.T  ->  column reductions of m12 with pos.T mask
    per2 = (jnp.log(jnp.sum(m12, axis=0, keepdims=True))
            - jnp.log(jnp.sum(m12 * pos.T, axis=0, keepdims=True)))         # (1, N)
    total = (jnp.sum(per1, axis=0, keepdims=True)
             + jnp.sum(per2, axis=1, keepdims=True))                        # (1, 1)
    loss_ref[...] = total * inv_n                                           # l1 + l2

    # ---- ChebConv heads (K=2, sym, lambda_max=2):
    #   T0 = X ; T1 = -(D^-1/2 A D^-1/2) X ; out = [T0 | T1] @ [W0 ; W1] + b
    deg1 = jnp.sum(adj1.astype(f32), axis=1, keepdims=True)
    deg2 = jnp.sum(adj2.astype(f32), axis=1, keepdims=True)
    dinv1 = jnp.where(deg1 > 0, jax.lax.rsqrt(deg1), 0.0)
    dinv2 = jnp.where(deg2 > 0, jax.lax.rsqrt(deg2), 0.0)
    t1_1 = -(dinv1 * jnp.dot(adj1, (dinv1 * enc1).astype(bf16),
                             preferred_element_type=f32))
    t1_2 = -(dinv2 * jnp.dot(adj2, (dinv2 * enc2).astype(bf16),
                             preferred_element_type=f32))
    t1 = jnp.concatenate([t1_1, t1_2], axis=0)                              # (2N, H)
    feat = jnp.concatenate([enc, t1], axis=1).astype(bf16)                  # (2N, 2H)
    res_ref[...] = (jnp.dot(feat, cw_ref[...], preferred_element_type=f32)
                    + cb)                                                   # (2N, 2)


def dgcl_fused(params, adj1, adj2, x1, x2, pos1, tau):
    n = x1.shape[0]
    h = params['gnn_w'].shape[1]
    ph = params['w1'].shape[1]
    p = params['w2'].shape[1]
    bf16 = jnp.bfloat16

    # Batch the two views on the row axis; bf16 MXU operands (f32 accumulation).
    x_stack = jnp.concatenate([x1, x2], axis=0).astype(bf16)                # (2N, F)
    adj1_b = adj1.astype(bf16)
    adj2_b = adj2.astype(bf16)
    gnn_w = params['gnn_w'].astype(bf16)
    w1 = params['w1'].astype(bf16)
    w2 = params['w2'].astype(bf16)
    # Pack the four (H, 1) Cheb weights into one (2H, 2) matrix (single matmul).
    cw0 = jnp.concatenate([params['cheb1_w0'], params['cheb2_w0']], axis=1)
    cw1 = jnp.concatenate([params['cheb1_w1'], params['cheb2_w1']], axis=1)
    cw = jnp.concatenate([cw0, cw1], axis=0).astype(bf16)                   # (2H, 2)
    cb = jnp.concatenate([params['cheb1_b'], params['cheb2_b']], axis=1)    # (1, 2)

    # Pack the seven tiny (1, ·) rows into a single (8, W) VMEM tile.
    width = max(h, ph, p, 2)

    def _pad(r):
        return jnp.pad(r, ((0, 0), (0, width - r.shape[1])))

    bias_pack = jnp.concatenate(
        [_pad(params['gnn_b']), _pad(params['b1']), _pad(params['bn_g']),
         _pad(params['bn_b']), _pad(params['b2']), _pad(cb),
         jnp.zeros((2, width), jnp.float32)], axis=0)                       # (8, W)

    res, con = pl.pallas_call(
        functools.partial(_dgcl_fused_kernel, n=n, h=h, ph=ph, p=p, tau=tau),
        out_shape=(jax.ShapeDtypeStruct((2 * n, 2), jnp.float32),
                   jax.ShapeDtypeStruct((1, 1), jnp.float32)),
        in_specs=[_VMEM] * 9,
        out_specs=(_VMEM, _VMEM),
    )(adj1_b, adj2_b, x_stack, gnn_w, w1, w2, cw, bias_pack, pos1)

    # Head/row selection (view-1 rows take Cheb head 1, view-2 rows take head 2)
    # is done here so the kernel issues a single full-tile output store.
    emb = jnp.concatenate([res[0:n, 0:1], res[n:, 1:2]], axis=1)            # (N, 2)
    return emb, con[0, 0]


# ------------------------------ param setup ----------------------------------

def init_params(key, in_dim, gnn_out, proj_hidden, proj_size):
    ks = jax.random.split(key, 7)

    def xavier(k, fan_in, fan_out, gain=1.0):
        std = gain * jnp.sqrt(2.0 / (fan_in + fan_out))
        return (std * jax.random.normal(k, (fan_in, fan_out))).astype(jnp.float32)

    pdict = {}
    pdict['gnn_w'] = xavier(ks[0], in_dim, gnn_out)
    pdict['gnn_b'] = jnp.zeros((1, gnn_out), jnp.float32)
    pdict['w1'] = xavier(ks[1], gnn_out, proj_hidden, gain=1.414)
    pdict['b1'] = jnp.zeros((1, proj_hidden), jnp.float32)
    pdict['bn_g'] = jnp.ones((1, proj_hidden), jnp.float32)
    pdict['bn_b'] = jnp.zeros((1, proj_hidden), jnp.float32)
    pdict['w2'] = xavier(ks[2], proj_hidden, proj_size, gain=1.414)
    pdict['b2'] = jnp.zeros((1, proj_size), jnp.float32)
    pdict['cheb1_w0'] = xavier(ks[3], gnn_out, 1)
    pdict['cheb1_w1'] = xavier(ks[4], gnn_out, 1)
    pdict['cheb1_b'] = jnp.zeros((1, 1), jnp.float32)
    pdict['cheb2_w0'] = xavier(ks[5], gnn_out, 1)
    pdict['cheb2_w1'] = xavier(ks[6], gnn_out, 1)
    pdict['cheb2_b'] = jnp.zeros((1, 1), jnp.float32)
    return pdict


# ------------------------------- forward -------------------------------------

def dgcl_forward(params, aug_adj_1, aug_adj_2, aug_feat_1, aug_feat_2,
                 pos1, edge_index1, edge_index2, neg_key, *, tau):
    # one fused Pallas kernel: GCN -> MLP -> contrastive -> Cheb heads
    emb, con_loss = dgcl_fused(params, aug_adj_1, aug_adj_2,
                               aug_feat_1, aug_feat_2, pos1, tau)
    emb1 = emb[:, 0:1]
    emb2 = emb[:, 1:2]

    # edge reconstruction losses — tiny gathers + elementwise, kept as JAX glue
    src1, dst1 = edge_index1[0], edge_index1[1]
    pos_score = jnp.sum(emb1[src1] * emb1[dst1], axis=1)
    pos_loss = -jnp.mean(jnp.log(jax.nn.sigmoid(pos_score) + 1e-15))

    # TODO(synk): torch_geometric.negative_sampling excludes existing edges; here we
    # draw uniform random node pairs deterministically instead.
    num_neg = edge_index2.shape[1]
    n = emb1.shape[0]
    k1, k2 = jax.random.split(neg_key)
    neg_src = jax.random.randint(k1, (num_neg,), 0, n)
    neg_dst = jax.random.randint(k2, (num_neg,), 0, n)
    neg_score = jnp.sum(emb1[neg_src] * emb1[neg_dst], axis=1)
    neg_loss = -jnp.mean(jnp.log(1.0 - jax.nn.sigmoid(neg_score) + 1e-15))
    r_loss = (pos_loss + neg_loss) / 2.0

    return emb1, emb2, emb, con_loss, r_loss


# --------------------------------- main ---------------------------------------

if __name__ == "__main__":
    N, F_IN, GNN_OUT, PROJ_H, PROJ = 8, 16, 32, 32, 16
    TAU = 0.5

    key = jax.random.PRNGKey(0)
    k_param, k_adj1, k_adj2, k_f1, k_f2, k_e, k_neg = jax.random.split(key, 7)

    params = init_params(k_param, F_IN, GNN_OUT, PROJ_H, PROJ)

    def rand_adj(k):
        a = (jax.random.uniform(k, (N, N)) < 0.3).astype(jnp.float32)
        a = jnp.maximum(a, a.T)                                 # symmetric
        a = jnp.maximum(a, jnp.eye(N, dtype=jnp.float32))       # self loops
        return a

    aug_adj_1 = rand_adj(k_adj1)
    aug_adj_2 = rand_adj(k_adj2)
    aug_feat_1 = jax.random.normal(k_f1, (N, F_IN), jnp.float32)
    aug_feat_2 = jax.random.normal(k_f2, (N, F_IN), jnp.float32)

    pos1 = jnp.eye(N, dtype=jnp.float32)    # positive-pair mask

    E = 12
    ek1, ek2 = jax.random.split(k_e)
    edge_index1 = jax.random.randint(ek1, (2, E), 0, N)
    edge_index2 = jax.random.randint(ek2, (2, E), 0, N)

    fwd = jax.jit(dgcl_forward, static_argnames=("tau",))
    outs = fwd(params, aug_adj_1, aug_adj_2, aug_feat_1, aug_feat_2,
               pos1, edge_index1, edge_index2, k_neg, tau=TAU)
    outs = jax.block_until_ready(outs)
    emb1, emb2, emb, con_loss, r_loss = outs

    assert emb1.shape == (N, 1) and emb2.shape == (N, 1) and emb.shape == (N, 2)
    assert bool(jnp.isfinite(con_loss)) and bool(jnp.isfinite(r_loss))
    print("KERNEL_OK")
</pallas_src>

<mosaic_0001>
module attributes {stable_mosaic.version = 11 : i64} {
  func.func @_dgcl_fused_kernel(%arg0: memref<8x8xbf16, #tpu.memory_space<vmem>>, %arg1: memref<8x8xbf16, #tpu.memory_space<vmem>>, %arg2: memref<16x16xbf16, #tpu.memory_space<vmem>>, %arg3: memref<16x32xbf16, #tpu.memory_space<vmem>>, %arg4: memref<32x32xbf16, #tpu.memory_space<vmem>>, %arg5: memref<32x16xbf16, #tpu.memory_space<vmem>>, %arg6: memref<64x2xbf16, #tpu.memory_space<vmem>>, %arg7: memref<8x32xf32, #tpu.memory_space<vmem>>, %arg8: memref<8x8xf32, #tpu.memory_space<vmem>>, %arg9: memref<16x2xf32, #tpu.memory_space<vmem>>, %arg10: memref<1x1xf32, #tpu.memory_space<vmem>>) attributes {dimension_semantics = [], scalar_prefetch = 0 : i64, scratch_operands = 0 : i64, tpu.core_type = #tpu.core_type<tc>} {
    %c0 = arith.constant 0 : index
    %c0_0 = arith.constant 0 : index
    %0 = vector.load %arg7[%c0, %c0_0] : memref<8x32xf32, #tpu.memory_space<vmem>>, vector<1x32xf32>
    %c1 = arith.constant 1 : index
    %c0_1 = arith.constant 0 : index
    %1 = vector.load %arg7[%c1, %c0_1] : memref<8x32xf32, #tpu.memory_space<vmem>>, vector<1x32xf32>
    %c2 = arith.constant 2 : index
    %c0_2 = arith.constant 0 : index
    %2 = vector.load %arg7[%c2, %c0_2] : memref<8x32xf32, #tpu.memory_space<vmem>>, vector<1x32xf32>
    %c3 = arith.constant 3 : index
    %c0_3 = arith.constant 0 : index
    %3 = vector.load %arg7[%c3, %c0_3] : memref<8x32xf32, #tpu.memory_space<vmem>>, vector<1x32xf32>
    %c4 = arith.constant 4 : index
    %c0_4 = arith.constant 0 : index
    %4 = vector.load %arg7[%c4, %c0_4] : memref<8x32xf32, #tpu.memory_space<vmem>>, vector<1x16xf32>
    %c5 = arith.constant 5 : index
    %c0_5 = arith.constant 0 : index
    %5 = vector.load %arg7[%c5, %c0_5] : memref<8x32xf32, #tpu.memory_space<vmem>>, vector<1x2xf32>
    %c0_6 = arith.constant 0 : index
    %c0_7 = arith.constant 0 : index
    %6 = vector.load %arg0[%c0_6, %c0_7] : memref<8x8xbf16, #tpu.memory_space<vmem>>, vector<8x8xbf16>
    %c0_8 = arith.constant 0 : index
    %c0_9 = arith.constant 0 : index
    %7 = vector.load %arg1[%c0_8, %c0_9] : memref<8x8xbf16, #tpu.memory_space<vmem>>, vector<8x8xbf16>
    %c0_10 = arith.constant 0 : index
    %c0_11 = arith.constant 0 : index
    %8 = vector.load %arg2[%c0_10, %c0_11] : memref<16x16xbf16, #tpu.memory_space<vmem>>, vector<16x16xbf16>
    %c0_12 = arith.constant 0 : index
    %c0_13 = arith.constant 0 : index
    %9 = vector.load %arg3[%c0_12, %c0_13] : memref<16x32xbf16, #tpu.memory_space<vmem>>, vector<16x32xbf16>
    %cst = arith.constant dense<0.000000e+00> : vector<16x32xf32>
    %10 = tpu.matmul %8, %9, %cst {dimension_numbers = #tpu.dot_dimension_numbers<[1], [0], [0], [1], [0, 0, 1, 1], [], []>} : vector<16x16xbf16>, vector<16x32xbf16>, vector<16x32xf32> -> vector<16x32xf32>
    %11 = arith.truncf %10 : vector<16x32xf32> to vector<16x32xbf16>
    %12 = vector.extract_strided_slice %11 {offsets = [0, 0], sizes = [8, 32], strides = [1, 1]} : vector<16x32xbf16> to vector<8x32xbf16>
    %cst_14 = arith.constant dense<0.000000e+00> : vector<8x32xf32>
    %13 = tpu.matmul %6, %12, %cst_14 {dimension_numbers = #tpu.dot_dimension_numbers<[1], [0], [0], [1], [0, 0, 1, 1], [], []>} : vector<8x8xbf16>, vector<8x32xbf16>, vector<8x32xf32> -> vector<8x32xf32>
    %14 = vector.broadcast %0 : vector<1x32xf32> to vector<8x32xf32>
    %15 = arith.addf %13, %14 : vector<8x32xf32>
    %16 = vector.extract_strided_slice %11 {offsets = [8, 0], sizes = [8, 32], strides = [1, 1]} : vector<16x32xbf16> to vector<8x32xbf16>
    %cst_15 = arith.constant dense<0.000000e+00> : vector<8x32xf32>
    %17 = tpu.matmul %7, %16, %cst_15 {dimension_numbers = #tpu.dot_dimension_numbers<[1], [0], [0], [1], [0, 0, 1, 1], [], []>} : vector<8x8xbf16>, vector<8x32xbf16>, vector<8x32xf32> -> vector<8x32xf32>
    %18 = vector.broadcast %0 : vector<1x32xf32> to vector<8x32xf32>
    %19 = arith.addf %17, %18 : vector<8x32xf32>
    %20 = tpu.concatenate %15, %19 in 0 : vector<8x32xf32>, vector<8x32xf32> -> vector<16x32xf32>
    %21 = arith.truncf %20 : vector<16x32xf32> to vector<16x32xbf16>
    %c0_16 = arith.constant 0 : index
    %c0_17 = arith.constant 0 : index
    %22 = vector.load %arg4[%c0_16, %c0_17] : memref<32x32xbf16, #tpu.memory_space<vmem>>, vector<32x32xbf16>
    %cst_18 = arith.constant dense<0.000000e+00> : vector<16x32xf32>
    %23 = tpu.matmul %21, %22, %cst_18 {dimension_numbers = #tpu.dot_dimension_numbers<[1], [0], [0], [1], [0, 0, 1, 1], [], []>} : vector<16x32xbf16>, vector<32x32xbf16>, vector<16x32xf32> -> vector<16x32xf32>
    %24 = vector.broadcast %1 : vector<1x32xf32> to vector<16x32xf32>
    %25 = arith.addf %23, %24 : vector<16x32xf32>
    %26 = vector.extract_strided_slice %25 {offsets = [0, 0], sizes = [8, 32], strides = [1, 1]} : vector<16x32xf32> to vector<8x32xf32>
    %cst_19 = arith.constant dense<0.000000e+00> : vector<32xf32>
    %27 = vector.multi_reduction <add>, %26, %cst_19 [0] : vector<8x32xf32> to vector<32xf32>
    %28 = vector.shape_cast %27 : vector<32xf32> to vector<1x32xf32>
    %cst_20 = arith.constant 1.250000e-01 : f32
    %29 = vector.broadcast %cst_20 : f32 to vector<1x32xf32>
    %30 = arith.mulf %28, %29 : vector<1x32xf32>
    %31 = arith.mulf %26, %26 : vector<8x32xf32>
    %cst_21 = arith.constant dense<0.000000e+00> : vector<32xf32>
    %32 = vector.multi_reduction <add>, %31, %cst_21 [0] : vector<8x32xf32> to vector<32xf32>
    %33 = vector.shape_cast %32 : vector<32xf32> to vector<1x32xf32>
    %cst_22 = arith.constant 1.250000e-01 : f32
    %34 = vector.broadcast %cst_22 : f32 to vector<1x32xf32>
    %35 = arith.mulf %33, %34 : vector<1x32xf32>
    %36 = arith.mulf %30, %30 : vector<1x32xf32>
    %37 = arith.subf %35, %36 : vector<1x32xf32>
    %cst_23 = arith.constant 0.000000e+00 : f32
    %38 = vector.broadcast %cst_23 : f32 to vector<1x32xf32>
    %39 = arith.maximumf %37, %38 : vector<1x32xf32>
    %40 = vector.broadcast %30 : vector<1x32xf32> to vector<8x32xf32>
    %41 = arith.subf %26, %40 : vector<8x32xf32>
    %cst_24 = arith.constant 9.99999974E-6 : f32
    %42 = vector.broadcast %cst_24 : f32 to vector<1x32xf32>
    %43 = arith.addf %39, %42 : vector<1x32xf32>
    %44 = math.rsqrt %43 : vector<1x32xf32>
    %45 = vector.broadcast %44 : vector<1x32xf32> to vector<8x32xf32>
    %46 = arith.mulf %41, %45 : vector<8x32xf32>
    %47 = vector.broadcast %2 : vector<1x32xf32> to vector<8x32xf32>
    %48 = arith.mulf %46, %47 : vector<8x32xf32>
    %49 = vector.broadcast %3 : vector<1x32xf32> to vector<8x32xf32>
    %50 = arith.addf %48, %49 : vector<8x32xf32>
    %cst_25 = arith.constant 0.000000e+00 : f32
    %51 = vector.broadcast %cst_25 : f32 to vector<8x32xf32>
    %52 = arith.cmpf ogt, %50, %51 : vector<8x32xf32>
    %53 = math.exp %50 : vector<8x32xf32>
    %cst_26 = arith.constant 1.000000e+00 : f32
    %54 = vector.broadcast %cst_26 : f32 to vector<8x32xf32>
    %55 = arith.subf %53, %54 : vector<8x32xf32>
    %56 = arith.select %52, %50, %55 : vector<8x32xi1>, vector<8x32xf32>
    %57 = vector.extract_strided_slice %25 {offsets = [8, 0], sizes = [8, 32], strides = [1, 1]} : vector<16x32xf32> to vector<8x32xf32>
    %cst_27 = arith.constant dense<0.000000e+00> : vector<32xf32>
    %58 = vector.multi_reduction <add>, %57, %cst_27 [0] : vector<8x32xf32> to vector<32xf32>
    %59 = vector.shape_cast %58 : vector<32xf32> to vector<1x32xf32>
    %cst_28 = arith.constant 1.250000e-01 : f32
    %60 = vector.broadcast %cst_28 : f32 to vector<1x32xf32>
    %61 = arith.mulf %59, %60 : vector<1x32xf32>
    %62 = arith.mulf %57, %57 : vector<8x32xf32>
    %cst_29 = arith.constant dense<0.000000e+00> : vector<32xf32>
    %63 = vector.multi_reduction <add>, %62, %cst_29 [0] : vector<8x32xf32> to vector<32xf32>
    %64 = vector.shape_cast %63 : vector<32xf32> to vector<1x32xf32>
    %cst_30 = arith.constant 1.250000e-01 : f32
    %65 = vector.broadcast %cst_30 : f32 to vector<1x32xf32>
    %66 = arith.mulf %64, %65 : vector<1x32xf32>
    %67 = arith.mulf %61, %61 : vector<1x32xf32>
    %68 = arith.subf %66, %67 : vector<1x32xf32>
    %cst_31 = arith.constant 0.000000e+00 : f32
    %69 = vector.broadcast %cst_31 : f32 to vector<1x32xf32>
    %70 = arith.maximumf %68, %69 : vector<1x32xf32>
    %71 = vector.broadcast %61 : vector<1x32xf32> to vector<8x32xf32>
    %72 = arith.subf %57, %71 : vector<8x32xf32>
    %cst_32 = arith.constant 9.99999974E-6 : f32
    %73 = vector.broadcast %cst_32 : f32 to vector<1x32xf32>
    %74 = arith.addf %70, %73 : vector<1x32xf32>
    %75 = math.rsqrt %74 : vector<1x32xf32>
    %76 = vector.broadcast %75 : vector<1x32xf32> to vector<8x32xf32>
    %77 = arith.mulf %72, %76 : vector<8x32xf32>
    %78 = vector.broadcast %2 : vector<1x32xf32> to vector<8x32xf32>
    %79 = arith.mulf %77, %78 : vector<8x32xf32>
    %80 = vector.broadcast %3 : vector<1x32xf32> to vector<8x32xf32>
    %81 = arith.addf %79, %80 : vector<8x32xf32>
    %cst_33 = arith.constant 0.000000e+00 : f32
    %82 = vector.broadcast %cst_33 : f32 to vector<8x32xf32>
    %83 = arith.cmpf ogt, %81, %82 : vector<8x32xf32>
    %84 = math.exp %81 : vector<8x32xf32>
    %cst_34 = arith.constant 1.000000e+00 : f32
    %85 = vector.broadcast %cst_34 : f32 to vector<8x32xf32>
    %86 = arith.subf %84, %85 : vector<8x32xf32>
    %87 = arith.select %83, %81, %86 : vector<8x32xi1>, vector<8x32xf32>
    %88 = tpu.concatenate %56, %87 in 0 : vector<8x32xf32>, vector<8x32xf32> -> vector<16x32xf32>
    %89 = arith.truncf %88 : vector<16x32xf32> to vector<16x32xbf16>
    %c0_35 = arith.constant 0 : index
    %c0_36 = arith.constant 0 : index
    %90 = vector.load %arg5[%c0_35, %c0_36] : memref<32x16xbf16, #tpu.memory_space<vmem>>, vector<32x16xbf16>
    %cst_37 = arith.constant dense<0.000000e+00> : vector<16x16xf32>
    %91 = tpu.matmul %89, %90, %cst_37 {dimension_numbers = #tpu.dot_dimension_numbers<[1], [0], [0], [1], [0, 0, 1, 1], [], []>} : vector<16x32xbf16>, vector<32x16xbf16>, vector<16x16xf32> -> vector<16x16xf32>
    %92 = vector.broadcast %4 : vector<1x16xf32> to vector<16x16xf32>
    %93 = arith.addf %91, %92 : vector<16x16xf32>
    %94 = vector.extract_strided_slice %93 {offsets = [0, 0], sizes = [8, 16], strides = [1, 1]} : vector<16x16xf32> to vector<8x16xf32>
    %95 = vector.extract_strided_slice %93 {offsets = [8, 0], sizes = [8, 16], strides = [1, 1]} : vector<16x16xf32> to vector<8x16xf32>
    %96 = arith.mulf %94, %94 : vector<8x16xf32>
    %cst_38 = arith.constant dense<0.000000e+00> : vector<8xf32>
    %97 = vector.multi_reduction <add>, %96, %cst_38 [1] : vector<8x16xf32> to vector<8xf32>
    %98 = vector.shape_cast %97 : vector<8xf32> to vector<8x1xf32>
    %cst_39 = arith.constant 1.000000e-24 : f32
    %99 = vector.broadcast %cst_39 : f32 to vector<8x1xf32>
    %100 = arith.maximumf %98, %99 : vector<8x1xf32>
    %101 = math.rsqrt %100 : vector<8x1xf32>
    %102 = vector.broadcast %101 : vector<8x1xf32> to vector<8x16xf32>
    %103 = arith.mulf %94, %102 : vector<8x16xf32>
    %104 = arith.mulf %95, %95 : vector<8x16xf32>
    %cst_40 = arith.constant dense<0.000000e+00> : vector<8xf32>
    %105 = vector.multi_reduction <add>, %104, %cst_40 [1] : vector<8x16xf32> to vector<8xf32>
    %106 = vector.shape_cast %105 : vector<8xf32> to vector<8x1xf32>
    %cst_41 = arith.constant 1.000000e-24 : f32
    %107 = vector.broadcast %cst_41 : f32 to vector<8x1xf32>
    %108 = arith.maximumf %106, %107 : vector<8x1xf32>
    %109 = math.rsqrt %108 : vector<8x1xf32>
    %110 = vector.broadcast %109 : vector<8x1xf32> to vector<8x16xf32>
    %111 = arith.mulf %95, %110 : vector<8x16xf32>
    %112 = arith.truncf %103 : vector<8x16xf32> to vector<8x16xbf16>
    %113 = arith.truncf %111 : vector<8x16xf32> to vector<8x16xbf16>
    %cst_42 = arith.constant dense<0.000000e+00> : vector<8x8xf32>
    %114 = tpu.matmul %112, %113, %cst_42 {dimension_numbers = #tpu.dot_dimension_numbers<[1], [1], [0], [0], [0, 0, 1, 0], [], []>} : vector<8x16xbf16>, vector<8x16xbf16>, vector<8x8xf32> -> vector<8x8xf32>
    %cst_43 = arith.constant 2.000000e+00 : f32
    %115 = vector.broadcast %cst_43 : f32 to vector<8x8xf32>
    %116 = arith.mulf %114, %115 : vector<8x8xf32>
    %117 = math.exp %116 : vector<8x8xf32>
    %c0_44 = arith.constant 0 : index
    %c0_45 = arith.constant 0 : index
    %118 = vector.load %arg8[%c0_44, %c0_45] : memref<8x8xf32, #tpu.memory_space<vmem>>, vector<8x8xf32>
    %cst_46 = arith.constant dense<0.000000e+00> : vector<8xf32>
    %119 = vector.multi_reduction <add>, %117, %cst_46 [1] : vector<8x8xf32> to vector<8xf32>
    %120 = vector.shape_cast %119 : vector<8xf32> to vector<8x1xf32>
    %121 = math.log %120 : vector<8x1xf32>
    %122 = arith.mulf %117, %118 : vector<8x8xf32>
    %cst_47 = arith.constant dense<0.000000e+00> : vector<8xf32>
    %123 = vector.multi_reduction <add>, %122, %cst_47 [1] : vector<8x8xf32> to vector<8xf32>
    %124 = vector.shape_cast %123 : vector<8xf32> to vector<8x1xf32>
    %125 = math.log %124 : vector<8x1xf32>
    %126 = arith.subf %121, %125 : vector<8x1xf32>
    %cst_48 = arith.constant dense<0.000000e+00> : vector<8xf32>
    %127 = vector.multi_reduction <add>, %117, %cst_48 [0] : vector<8x8xf32> to vector<8xf32>
    %128 = vector.shape_cast %127 : vector<8xf32> to vector<1x8xf32>
    %129 = math.log %128 : vector<1x8xf32>
    %130 = tpu.transpose %118, [1, 0] : vector<8x8xf32> -> vector<8x8xf32>
    %131 = arith.mulf %117, %130 : vector<8x8xf32>
    %cst_49 = arith.constant dense<0.000000e+00> : vector<8xf32>
    %132 = vector.multi_reduction <add>, %131, %cst_49 [0] : vector<8x8xf32> to vector<8xf32>
    %133 = vector.shape_cast %132 : vector<8xf32> to vector<1x8xf32>
    %134 = math.log %133 : vector<1x8xf32>
    %135 = arith.subf %129, %134 : vector<1x8xf32>
    %cst_50 = arith.constant dense<0.000000e+00> : vector<1xf32>
    %136 = vector.multi_reduction <add>, %126, %cst_50 [0] : vector<8x1xf32> to vector<1xf32>
    %137 = vector.shape_cast %136 : vector<1xf32> to vector<1x1xf32>
    %cst_51 = arith.constant dense<0.000000e+00> : vector<1xf32>
    %138 = vector.multi_reduction <add>, %135, %cst_51 [1] : vector<1x8xf32> to vector<1xf32>
    %139 = vector.shape_cast %138 : vector<1xf32> to vector<1x1xf32>
    %140 = arith.addf %137, %139 : vector<1x1xf32>
    %cst_52 = arith.constant 1.250000e-01 : f32
    %141 = vector.broadcast %cst_52 : f32 to vector<1x1xf32>
    %142 = arith.mulf %140, %141 : vector<1x1xf32>
    %c0_53 = arith.constant 0 : index
    %c0_54 = arith.constant 0 : index
    %143 = vector.load %arg10[%c0_53, %c0_54] : memref<1x1xf32, #tpu.memory_space<vmem>>, vector<1x1xf32>
    tpu.vector_store %arg10[%c0_53, %c0_54], %142 {strides = array<i32>} : memref<1x1xf32, #tpu.memory_space<vmem>>, vector<1x1xf32>,
    %144 = arith.extf %6 : vector<8x8xbf16> to vector<8x8xf32>
    %cst_55 = arith.constant dense<0.000000e+00> : vector<8xf32>
    %145 = vector.multi_reduction <add>, %144, %cst_55 [1] : vector<8x8xf32> to vector<8xf32>
    %146 = vector.shape_cast %145 : vector<8xf32> to vector<8x1xf32>
    %147 = arith.extf %7 : vector<8x8xbf16> to vector<8x8xf32>
    %cst_56 = arith.constant dense<0.000000e+00> : vector<8xf32>
    %148 = vector.multi_reduction <add>, %147, %cst_56 [1] : vector<8x8xf32> to vector<8xf32>
    %149 = vector.shape_cast %148 : vector<8xf32> to vector<8x1xf32>
    %cst_57 = arith.constant 0.000000e+00 : f32
    %150 = vector.broadcast %cst_57 : f32 to vector<8x1xf32>
    %151 = arith.cmpf ogt, %146, %150 : vector<8x1xf32>
    %152 = math.rsqrt %146 : vector<8x1xf32>
    %cst_58 = arith.constant 0.000000e+00 : f32
    %153 = vector.broadcast %cst_58 : f32 to vector<8x1xf32>
    %154 = arith.select %151, %152, %153 : vector<8x1xi1>, vector<8x1xf32>
    %cst_59 = arith.constant 0.000000e+00 : f32
    %155 = vector.broadcast %cst_59 : f32 to vector<8x1xf32>
    %156 = arith.cmpf ogt, %149, %155 : vector<8x1xf32>
    %157 = math.rsqrt %149 : vector<8x1xf32>
    %cst_60 = arith.constant 0.000000e+00 : f32
    %158 = vector.broadcast %cst_60 : f32 to vector<8x1xf32>
    %159 = arith.select %156, %157, %158 : vector<8x1xi1>, vector<8x1xf32>
    %160 = vector.broadcast %154 : vector<8x1xf32> to vector<8x32xf32>
    %161 = arith.mulf %160, %15 : vector<8x32xf32>
    %162 = arith.truncf %161 : vector<8x32xf32> to vector<8x32xbf16>
    %cst_61 = arith.constant dense<0.000000e+00> : vector<8x32xf32>
    %163 = tpu.matmul %6, %162, %cst_61 {dimension_numbers = #tpu.dot_dimension_numbers<[1], [0], [0], [1], [0, 0, 1, 1], [], []>} : vector<8x8xbf16>, vector<8x32xbf16>, vector<8x32xf32> -> vector<8x32xf32>
    %164 = vector.broadcast %154 : vector<8x1xf32> to vector<8x32xf32>
    %165 = arith.mulf %164, %163 : vector<8x32xf32>
    %cst_62 = arith.constant 0.000000e+00 : f32
    %166 = vector.broadcast %cst_62 : f32 to vector<8x32xf32>
    %167 = arith.subf %166, %165 : vector<8x32xf32>
    %168 = vector.broadcast %159 : vector<8x1xf32> to vector<8x32xf32>
    %169 = arith.mulf %168, %19 : vector<8x32xf32>
    %170 = arith.truncf %169 : vector<8x32xf32> to vector<8x32xbf16>
    %cst_63 = arith.constant dense<0.000000e+00> : vector<8x32xf32>
    %171 = tpu.matmul %7, %170, %cst_63 {dimension_numbers = #tpu.dot_dimension_numbers<[1], [0], [0], [1], [0, 0, 1, 1], [], []>} : vector<8x8xbf16>, vector<8x32xbf16>, vector<8x32xf32> -> vector<8x32xf32>
    %172 = vector.broadcast %159 : vector<8x1xf32> to vector<8x32xf32>
    %173 = arith.mulf %172, %171 : vector<8x32xf32>
    %cst_64 = arith.constant 0.000000e+00 : f32
    %174 = vector.broadcast %cst_64 : f32 to vector<8x32xf32>
    %175 = arith.subf %174, %173 : vector<8x32xf32>
    %176 = tpu.concatenate %167, %175 in 0 : vector<8x32xf32>, vector<8x32xf32> -> vector<16x32xf32>
    %177 = tpu.concatenate %20, %176 in 1 : vector<16x32xf32>, vector<16x32xf32> -> vector<16x64xf32>
    %178 = arith.truncf %177 : vector<16x64xf32> to vector<16x64xbf16>
    %c0_65 = arith.constant 0 : index
    %c0_66 = arith.constant 0 : index
    %179 = vector.load %arg6[%c0_65, %c0_66] : memref<64x2xbf16, #tpu.memory_space<vmem>>, vector<64x2xbf16>
    %cst_67 = arith.constant dense<0.000000e+00> : vector<16x2xf32>
    %180 = tpu.matmul %178, %179, %cst_67 {dimension_numbers = #tpu.dot_dimension_numbers<[1], [0], [0], [1], [0, 0, 1, 1], [], []>} : vector<16x64xbf16>, vector<64x2xbf16>, vector<16x2xf32> -> vector<16x2xf32>
    %181 = vector.broadcast %5 : vector<1x2xf32> to vector<16x2xf32>
    %182 = arith.addf %180, %181 : vector<16x2xf32>
    %c0_68 = arith.constant 0 : index
    %c0_69 = arith.constant 0 : index
    %183 = vector.load %arg9[%c0_68, %c0_69] : memref<16x2xf32, #tpu.memory_space<vmem>>, vector<16x2xf32>
    tpu.vector_store %arg9[%c0_68, %c0_69], %182 {strides = array<i32>} : memref<16x2xf32, #tpu.memory_space<vmem>>, vector<16x2xf32>,
    return
  }
}

</mosaic_0001>

<llo_original>
// kernel: dgcl_forward.1
$region0: #{dgcl_forward.1}
  #allocation0 [shape = 'u32[]', space=smem, size = 0x4, offset = 0x4, fixed_abs, tag = 'smem constant byte address 0x4 - core index']
  #allocation1 [shape = 'u32[144,128]{1,0:T(1,128)}', space=vmem, size = 0x12000, scoped, tag = 'internal scratch']
  %s0 = inlined_call_operand.vmem [shape: bf16[8,8], index: 0, kind: input, shape index: {}]
  %s1 = inlined_call_operand.vmem [shape: bf16[8,8], index: 1, kind: input, shape index: {}]
  %s2 = inlined_call_operand.vmem [shape: bf16[16,16], index: 2, kind: input, shape index: {}]
  %s3 = inlined_call_operand.vmem [shape: bf16[16,32], index: 3, kind: input, shape index: {}]
  %s4 = inlined_call_operand.vmem [shape: bf16[32,32], index: 4, kind: input, shape index: {}]
  %s5 = inlined_call_operand.vmem [shape: bf16[32,16], index: 5, kind: input, shape index: {}]
  %s6 = inlined_call_operand.vmem [shape: bf16[64,2], index: 6, kind: input, shape index: {}]
  %s7 = inlined_call_operand.vmem [shape: f32[8,32], index: 7, kind: input, shape index: {}]
  %s8 = inlined_call_operand.vmem [shape: f32[8,8], index: 8, kind: input, shape index: {}]
  %s9 = inlined_call_operand.vmem [shape: f32[16,2], index: 9, kind: output, shape index: {0}]
  %s10 = inlined_call_operand.hbm [shape: f32[1,1], index: 10, kind: output, shape index: {1}]
  %11 = xla_tuple %s9, %s10
  %s12 = sld [smem:[#allocation0]]
  $region54: #{dgcl_forward.1} parent=0
    _
  %s14 = ssub.s32 1, %s12
  %s15 = scalar_select 0, %s14, %s12
  $region1: #{dgcl_forward.1} parent=0
    #allocation2 [shape = 'u8[512]{0}', space=vmem, size = 0x400, scoped, tag = 'output window, operand 1, single buffered']
    #allocation3 [shape = 's32[1]{0}', space=sflag, size = 0x4, scoped, tag = 'scoped memory for dgcl_forward.1']
    %16 = vsyncpa [#allocation3], 0
    // Predicated region
    $region2: #{dgcl_forward.1} parent=1 // pred_check
      _
    $region3: #{dgcl_forward.1} parent=1 // pred_check_branch
      %18 = sbr.rel (0) target = $region5
    $region4: #{dgcl_forward.1} parent=1 // pred_region
      _
    $region5: #{dgcl_forward.1} parent=1 // pred_fallthru
      _
    // Predicated region
    $region6: #{dgcl_forward.1} parent=1 // pred_check
      _
    $region7: #{dgcl_forward.1} parent=1 // pred_check_branch
      %20 = sbr.rel (0) target = $region9
    $region8: #{dgcl_forward.1} parent=1 // pred_region
      _
    $region9: #{dgcl_forward.1} parent=1 // pred_fallthru
      _
    // Predicated region
    $region10: #{dgcl_forward.1} parent=1 // pred_check
      _
    $region11: #{dgcl_forward.1} parent=1 // pred_check_branch
      %22 = sbr.rel (0) target = $region13
    $region12: #{dgcl_forward.1} parent=1 // pred_region
      _
    $region13: #{dgcl_forward.1} parent=1 // pred_fallthru
      _
    // Predicated region
    $region14: #{dgcl_forward.1} parent=1 // pred_check
      _
    $region15: #{dgcl_forward.1} parent=1 // pred_check_branch
      %24 = sbr.rel (0) target = $region17
    $region16: #{dgcl_forward.1} parent=1 // pred_region
      _
    $region17: #{dgcl_forward.1} parent=1 // pred_fallthru
      _
    // Predicated region
    $region18: #{dgcl_forward.1} parent=1 // pred_check
      _
    $region19: #{dgcl_forward.1} parent=1 // pred_check_branch
      %26 = sbr.rel (0) target = $region21
    $region20: #{dgcl_forward.1} parent=1 // pred_region
      _
    $region21: #{dgcl_forward.1} parent=1 // pred_fallthru
      _
    // Predicated region
    $region22: #{dgcl_forward.1} parent=1 // pred_check
      _
    $region23: #{dgcl_forward.1} parent=1 // pred_check_branch
      %28 = sbr.rel (0) target = $region25
    $region24: #{dgcl_forward.1} parent=1 // pred_region
      _
    $region25: #{dgcl_forward.1} parent=1 // pred_fallthru
      _
    // Predicated region
    $region26: #{dgcl_forward.1} parent=1 // pred_check
      _
    $region27: #{dgcl_forward.1} parent=1 // pred_check_branch
      %30 = sbr.rel (0) target = $region29
    $region28: #{dgcl_forward.1} parent=1 // pred_region
      _
    $region29: #{dgcl_forward.1} parent=1 // pred_fallthru
      _
    // Predicated region
    $region30: #{dgcl_forward.1} parent=1 // pred_check
      _
    $region31: #{dgcl_forward.1} parent=1 // pred_check_branch
      %32 = sbr.rel (0) target = $region33
    $region32: #{dgcl_forward.1} parent=1 // pred_region
      _
    $region33: #{dgcl_forward.1} parent=1 // pred_fallthru
      _
    // Predicated region
    $region34: #{dgcl_forward.1} parent=1 // pred_check
      _
    $region35: #{dgcl_forward.1} parent=1 // pred_check_branch
      %34 = sbr.rel (0) target = $region37
    $region36: #{dgcl_forward.1} parent=1 // pred_region
      _
    $region37: #{dgcl_forward.1} parent=1 // pred_fallthru
      _
    %v36 = vld [vmem:[%s7] sm:$0x1]
    %v37 = vld [vmem:[%s7 + $0x1] sm:$0x1]
    %v38 = vld [vmem:[%s7 + $0x2] sm:$0x1]
    %v39 = vld [vmem:[%s7 + $0x3] sm:$0x1]
    %v40 = vld [vmem:[%s7 + $0x4] sm:$0x1]
    %v41 = vld [vmem:[%s7 + $0x5] sm:$0x1]
    %v42 = vld [vmem:[%s0] sm:$0xf]
    %v43 = vld [vmem:[%s1] sm:$0xf]
    %v44 = vld [vmem:[%s2] sm:$0xf]
    %v45 = vld [vmem:[%s2 + $0x4] sm:$0xf]
    %v46 = vld [vmem:[%s3] sm:$0xf]
    %v47 = vld [vmem:[%s3 + $0x4] sm:$0xf]
    %v50 = vunpack.c.l.b16 %v44
    %v51 = vunpack.c.l.b16 %v45
    %v52 = vpack.c.b16 %v51, %v50
    %v55 = vunpack.c.l.b16 %v46
    %v56 = vunpack.c.l.b16 %v47
    %v57 = vpack.c.b16 %v56, %v55
    %vm59 = vcmask 130048
    %v61 = vsel %vm59, %v52, 0
    %63 = vmatprep.subr.bf16.mxu0 0
    %64 = vmatpush1.bf16.msra.mxu0 0
    %65 = vmatprep.subr.bf16.mxu0 0
    %66 = vmatpush1.bf16.msra.mxu0 0
    %67 = vmatprep.subr.bf16.mxu0 0
    %68 = vmatpush1.bf16.msra.mxu0 0
    %69 = vmatprep.subr.bf16.mxu0 0
    %70 = vmatpush1.bf16.msra.mxu0 0
    %71 = vmatprep.subr.bf16.mxu0 0
    %72 = vmatpush1.bf16.msra.mxu0 0
    %73 = vmatprep.subr.bf16.mxu0 0
    %74 = vmatpush1.bf16.msra.mxu0 0
    %75 = vmatprep.subr.bf16.mxu0 0
    %76 = vmatpush1.bf16.msra.mxu0 0
    %77 = vmatprep.subr.bf16.mxu0 0
    %78 = vmatpush1.bf16.msra.mxu0 %v57
    %79 = vmatprep.subr.bf16.mxu0 0
    %80 = vmatpush2.bf16.msra.mxu0 0
    %81 = vmatprep.subr.bf16.mxu0 0
    %82 = vmatpush2.bf16.msra.mxu0 0
    %83 = vmatprep.subr.bf16.mxu0 0
    %84 = vmatpush2.bf16.msra.mxu0 0
    %85 = vmatprep.subr.bf16.mxu0 0
    %86 = vmatpush2.bf16.msra.mxu0 0
    %87 = vmatprep.subr.bf16.mxu0 0
    %88 = vmatpush2.bf16.msra.mxu0 0
    %89 = vmatprep.subr.bf16.mxu0 0
    %90 = vmatpush2.bf16.msra.mxu0 0
    %91 = vmatprep.subr.bf16.mxu0 0
    %92 = vmatpush2.bf16.msra.mxu0 0
    %93 = vmatprep.subr.bf16.mxu0 0
    %94 = vmatpush2.bf16.msra.mxu0 0
    %95 = vmatprep.mubr.bf16.mxu0 0
    %96 = vmatmul.mubr.bf16.gmra.mxu0 %v61
    %v97 = vpop.f32.mrf.mxu0
    %v98 = vadd.f32 0.0, %v97
    %v99 = vpop.f32.mrf.mxu0
    %v100 = vpop.f32.mrf.mxu0
    %v101 = vadd.f32 0.0, %v100
    %v102 = vpop.f32.mrf.mxu0
    %103 = vdwg.mxu0
    %v104 = vpack.c.bf16 %v101, %v98
    %v105 = vlaneseq
    %v106 = vshrl.u32 %v105, 7
    %v107 = vsub.s32 0, %v106
    %v108 = vrot.slane %v36, %v107
    %vm109 = vcmask 64512
    %v111 = vsel %vm109, %v42, 0
    %vm113 = vcmask 1043456
    %v115 = vsel %vm113, %v104, 0
    %117 = vmatprep.subr.bf16.mxu0 0
    %118 = vmatpush1.bf16.msra.mxu0 0
    %119 = vmatprep.subr.bf16.mxu0 0
    %120 = vmatpush1.bf16.msra.mxu0 0
    %121 = vmatprep.subr.bf16.mxu0 0
    %122 = vmatpush1.bf16.msra.mxu0 0
    %123 = vmatprep.subr.bf16.mxu0 0
    %124 = vmatpush1.bf16.msra.mxu0 0
    %125 = vmatprep.subr.bf16.mxu0 0
    %126 = vmatpush1.bf16.msra.mxu0 0
    %127 = vmatprep.subr.bf16.mxu0 0
    %128 = vmatpush1.bf16.msra.mxu0 0
    %129 = vmatprep.subr.bf16.mxu0 0
    %130 = vmatpush1.bf16.msra.mxu0 0
    %131 = vmatprep.subr.bf16.mxu0 0
    %132 = vmatpush1.bf16.msra.mxu0 %v115
    %133 = vmatprep.subr.bf16.mxu0 0
    %134 = vmatpush2.bf16.msra.mxu0 0
    %135 = vmatprep.subr.bf16.mxu0 0
    %136 = vmatpush2.bf16.msra.mxu0 0
    %137 = vmatprep.subr.bf16.mxu0 0
    %138 = vmatpush2.bf16.msra.mxu0 0
    %139 = vmatprep.subr.bf16.mxu0 0
    %140 = vmatpush2.bf16.msra.mxu0 0
    %141 = vmatprep.subr.bf16.mxu0 0
    %142 = vmatpush2.bf16.msra.mxu0 0
    %143 = vmatprep.subr.bf16.mxu0 0
    %144 = vmatpush2.bf16.msra.mxu0 0
    %145 = vmatprep.subr.bf16.mxu0 0
    %146 = vmatpush2.bf16.msra.mxu0 0
    %147 = vmatprep.subr.bf16.mxu0 0
    %148 = vmatpush2.bf16.msra.mxu0 0
    %149 = vmatprep.mubr.bf16.mxu0 0
    %150 = vmatmul.mubr.bf16.gmra.mxu0 %v111
    %v151 = vpop.f32.mrf.mxu0
    %v152 = vadd.f32 %v108, %v151
    %v153 = vpop.f32.mrf.mxu0
    %v154 = vpop.f32.mrf.mxu0
    %v155 = vpop.f32.mrf.mxu0
    %156 = vdwg.mxu0
    %v158 = vrot.slane %v104, 4
    %v160 = vsel %vm109, %v43, 0
    %v163 = vsel %vm113, %v158, 0
    %165 = vmatprep.subr.bf16.mxu0 0
    %166 = vmatpush1.bf16.msra.mxu0 0
    %167 = vmatprep.subr.bf16.mxu0 0
    %168 = vmatpush1.bf16.msra.mxu0 0
    %169 = vmatprep.subr.bf16.mxu0 0
    %170 = vmatpush1.bf16.msra.mxu0 0
    %171 = vmatprep.subr.bf16.mxu0 0
    %172 = vmatpush1.bf16.msra.mxu0 0
    %173 = vmatprep.subr.bf16.mxu0 0
    %174 = vmatpush1.bf16.msra.mxu0 0
    %175 = vmatprep.subr.bf16.mxu0 0
    %176 = vmatpush1.bf16.msra.mxu0 0
    %177 = vmatprep.subr.bf16.mxu0 0
    %178 = vmatpush1.bf16.msra.mxu0 0
    %179 = vmatprep.subr.bf16.mxu0 0
    %180 = vmatpush1.bf16.msra.mxu0 %v163
    %181 = vmatprep.subr.bf16.mxu0 0
    %182 = vmatpush2.bf16.msra.mxu0 0
    %183 = vmatprep.subr.bf16.mxu0 0
    %184 = vmatpush2.bf16.msra.mxu0 0
    %185 = vmatprep.subr.bf16.mxu0 0
    %186 = vmatpush2.bf16.msra.mxu0 0
    %187 = vmatprep.subr.bf16.mxu0 0
    %188 = vmatpush2.bf16.msra.mxu0 0
    %189 = vmatprep.subr.bf16.mxu0 0
    %190 = vmatpush2.bf16.msra.mxu0 0
    %191 = vmatprep.subr.bf16.mxu0 0
    %192 = vmatpush2.bf16.msra.mxu0 0
    %193 = vmatprep.subr.bf16.mxu0 0
    %194 = vmatpush2.bf16.msra.mxu0 0
    %195 = vmatprep.subr.bf16.mxu0 0
    %196 = vmatpush2.bf16.msra.mxu0 0
    %197 = vmatprep.mubr.bf16.mxu0 0
    %198 = vmatmul.mubr.bf16.gmra.mxu0 %v160
    %v199 = vpop.f32.mrf.mxu0
    %v200 = vadd.f32 %v108, %v199
    %v201 = vpop.f32.mrf.mxu0
    %v202 = vpop.f32.mrf.mxu0
    %v203 = vpop.f32.mrf.mxu0
    %204 = vdwg.mxu0
    %v205 = vpack.c.bf16 %v200, %v152
    %v206 = vld [vmem:[%s4] sm:$0xf]
    %v207 = vld [vmem:[%s4 + $0x4] sm:$0xf]
    %v208 = vld [vmem:[%s4 + $0x8] sm:$0xf]
    %v209 = vld [vmem:[%s4 + $0xc] sm:$0xf]
    %v210 = vlaneseq
    %v211 = vshrl.u32 %v210, 7
    %v212 = vsub.s32 0, %v211
    %v213 = vrot.slane %v37, %v212
    %v218 = vunpack.c.l.b16 %v206
    %v219 = vunpack.c.l.b16 %v207
    %v220 = vunpack.c.l.b16 %v208
    %v221 = vunpack.c.l.b16 %v209
    %v222 = vpack.c.b16 %v219, %v218
    %v223 = vpack.c.b16 %v221, %v220
    %vm226 = vcmask 261120
    %v228 = vsel %vm226, %v205, 0
    %230 = vmatprep.subr.bf16.mxu0 0
    %231 = vmatpush1.bf16.msra.mxu0 0
    %232 = vmatprep.subr.bf16.mxu0 0
    %233 = vmatpush1.bf16.msra.mxu0 0
    %234 = vmatprep.subr.bf16.mxu0 0
    %235 = vmatpush1.bf16.msra.mxu0 0
    %236 = vmatprep.subr.bf16.mxu0 0
    %237 = vmatpush1.bf16.msra.mxu0 0
    %238 = vmatprep.subr.bf16.mxu0 0
    %239 = vmatpush1.bf16.msra.mxu0 0
    %240 = vmatprep.subr.bf16.mxu0 0
    %241 = vmatpush1.bf16.msra.mxu0 0
    %242 = vmatprep.subr.bf16.mxu0 0
    %243 = vmatpush1.bf16.msra.mxu0 %v223
    %244 = vmatprep.subr.bf16.mxu0 0
    %245 = vmatpush1.bf16.msra.mxu0 %v222
    %246 = vmatprep.subr.bf16.mxu0 0
    %247 = vmatpush2.bf16.msra.mxu0 0
    %248 = vmatprep.subr.bf16.mxu0 0
    %249 = vmatpush2.bf16.msra.mxu0 0
    %250 = vmatprep.subr.bf16.mxu0 0
    %251 = vmatpush2.bf16.msra.mxu0 0
    %252 = vmatprep.subr.bf16.mxu0 0
    %253 = vmatpush2.bf16.msra.mxu0 0
    %254 = vmatprep.subr.bf16.mxu0 0
    %255 = vmatpush2.bf16.msra.mxu0 0
    %256 = vmatprep.subr.bf16.mxu0 0
    %257 = vmatpush2.bf16.msra.mxu0 0
    %258 = vmatprep.subr.bf16.mxu0 0
    %259 = vmatpush2.bf16.msra.mxu0 0
    %260 = vmatprep.subr.bf16.mxu0 0
    %261 = vmatpush2.bf16.msra.mxu0 0
    %262 = vmatprep.mubr.bf16.mxu0 0
    %263 = vmatmul.mubr.bf16.gmra.mxu0 %v228
    %v264 = vpop.f32.mrf.mxu0
    %v265 = vadd.f32 %v213, %v264
    %v266 = vpop.f32.mrf.mxu0
    %v267 = vpop.f32.mrf.mxu0
    %v268 = vadd.f32 %v213, %v267
    %v269 = vpop.f32.mrf.mxu0
    %270 = vdwg.mxu0
    %v271 = vsel %vm226, %v265, 0.0
    %v272 = vrot.slane %v271, 4
    %v273 = vadd.f32 %v271, %v272
    %v274 = vrot.slane %v273, 2
    %v275 = vadd.f32 %v273, %v274
    %v276 = vrot.slane %v275, 1
    %v277 = vadd.f32 %v275, %v276
    %v278 = vmul.f32 %v277, 0.125
    %v279 = vmul.f32 %v265, %v265
    %v280 = vsel %vm226, %v279, 0.0
    %v281 = vrot.slane %v280, 4
    %v282 = vadd.f32 %v280, %v281
    %v283 = vrot.slane %v282, 2
    %v284 = vadd.f32 %v282, %v283
    %v285 = vrot.slane %v284, 1
    %v286 = vadd.f32 %v284, %v285
    %v287 = vmul.f32 %v286, 0.125
    %v288 = vmul.f32 %v278, %v278
    %v289 = vsub.f32 %v287, %v288
    %v290 = vmax.f32 %v289, 0.0
    %v291 = vsub.f32 %v265, %v278
    %v292 = vadd.f32 %v290, 1e-05
    %v293 = vrsqrt.pop %v292
    %v294 = vmul.f32 %v291, %v293
    %v295 = vlaneseq
    %v296 = vshrl.u32 %v295, 7
    %v297 = vsub.s32 0, %v296
    %v298 = vrot.slane %v38, %v297
    %v299 = vmul.f32 %v294, %v298
    %v300 = vlaneseq
    %v301 = vshrl.u32 %v300, 7
    %v302 = vsub.s32 0, %v301
    %v303 = vrot.slane %v39, %v302
    %v304 = vadd.f32 %v299, %v303
    %vm305 = vcmp.gt.f32.partialorder %v304, 0.0
    %v306 = vmul.f32 %v304, 1.442695
    %v307 = vpow.pop %v306
    %v308 = vsub.f32 %v307, 1.0
    %v309 = vsel %vm305, %v304, %v308
    %v310 = vsel %vm226, %v268, 0.0
    %v311 = vrot.slane %v310, 4
    %v312 = vadd.f32 %v310, %v311
    %v313 = vrot.slane %v312, 2
    %v314 = vadd.f32 %v312, %v313
    %v315 = vrot.slane %v314, 1
    %v316 = vadd.f32 %v314, %v315
    %v317 = vmul.f32 %v316, 0.125
    %v318 = vmul.f32 %v268, %v268
    %v319 = vsel %vm226, %v318, 0.0
    %v320 = vrot.slane %v319, 4
    %v321 = vadd.f32 %v319, %v320
    %v322 = vrot.slane %v321, 2
    %v323 = vadd.f32 %v321, %v322
    %v324 = vrot.slane %v323, 1
    %v325 = vadd.f32 %v323, %v324
    %v326 = vmul.f32 %v325, 0.125
    %v327 = vmul.f32 %v317, %v317
    %v328 = vsub.f32 %v326, %v327
    %v329 = vmax.f32 %v328, 0.0
    %v330 = vsub.f32 %v268, %v317
    %v331 = vadd.f32 %v329, 1e-05
    %v332 = vrsqrt.pop %v331
    %v333 = vmul.f32 %v330, %v332
    %v334 = vmul.f32 %v333, %v298
    %v335 = vadd.f32 %v334, %v303
    %vm336 = vcmp.gt.f32.partialorder %v335, 0.0
    %v337 = vmul.f32 %v335, 1.442695
    %v338 = vpow.pop %v337
    %v339 = vsub.f32 %v338, 1.0
    %v340 = vsel %vm336, %v335, %v339
    %v341 = vpack.c.bf16 %v340, %v309
    %v342 = vld [vmem:[%s5] sm:$0xf]
    %v343 = vld [vmem:[%s5 + $0x4] sm:$0xf]
    %v344 = vld [vmem:[%s5 + $0x8] sm:$0xf]
    %v345 = vld [vmem:[%s5 + $0xc] sm:$0xf]
    %v346 = vlaneseq
    %v347 = vshrl.u32 %v346, 7
    %v348 = vsub.s32 0, %v347
    %v349 = vrot.slane %v40, %v348
    %v354 = vunpack.c.l.b16 %v342
    %v355 = vunpack.c.l.b16 %v343
    %v356 = vunpack.c.l.b16 %v344
    %v357 = vunpack.c.l.b16 %v345
    %v358 = vpack.c.b16 %v355, %v354
    %v359 = vpack.c.b16 %v357, %v356
    %v363 = vsel %vm226, %v341, 0
    %365 = vmatprep.subr.bf16.mxu0 0
    %366 = vmatpush1.bf16.msra.mxu0 0
    %367 = vmatprep.subr.bf16.mxu0 0
    %368 = vmatpush1.bf16.msra.mxu0 0
    %369 = vmatprep.subr.bf16.mxu0 0
    %370 = vmatpush1.bf16.msra.mxu0 0
    %371 = vmatprep.subr.bf16.mxu0 0
    %372 = vmatpush1.bf16.msra.mxu0 0
    %373 = vmatprep.subr.bf16.mxu0 0
    %374 = vmatpush1.bf16.msra.mxu0 0
    %375 = vmatprep.subr.bf16.mxu0 0
    %376 = vmatpush1.bf16.msra.mxu0 0
    %377 = vmatprep.subr.bf16.mxu0 0
    %378 = vmatpush1.bf16.msra.mxu0 %v359
    %379 = vmatprep.subr.bf16.mxu0 0
    %380 = vmatpush1.bf16.msra.mxu0 %v358
    %381 = vmatprep.subr.bf16.mxu0 0
    %382 = vmatpush2.bf16.msra.mxu0 0
    %383 = vmatprep.subr.bf16.mxu0 0
    %384 = vmatpush2.bf16.msra.mxu0 0
    %385 = vmatprep.subr.bf16.mxu0 0
    %386 = vmatpush2.bf16.msra.mxu0 0
    %387 = vmatprep.subr.bf16.mxu0 0
    %388 = vmatpush2.bf16.msra.mxu0 0
    %389 = vmatprep.subr.bf16.mxu0 0
    %390 = vmatpush2.bf16.msra.mxu0 0
    %391 = vmatprep.subr.bf16.mxu0 0
    %392 = vmatpush2.bf16.msra.mxu0 0
    %393 = vmatprep.subr.bf16.mxu0 0
    %394 = vmatpush2.bf16.msra.mxu0 0
    %395 = vmatprep.subr.bf16.mxu0 0
    %396 = vmatpush2.bf16.msra.mxu0 0
    %397 = vmatprep.mubr.bf16.mxu0 0
    %398 = vmatmul.mubr.bf16.gmra.mxu0 %v363
    %v399 = vpop.f32.mrf.mxu0
    %v400 = vadd.f32 %v349, %v399
    %v401 = vpop.f32.mrf.mxu0
    %v402 = vpop.f32.mrf.mxu0
    %v403 = vadd.f32 %v349, %v402
    %v404 = vpop.f32.mrf.mxu0
    %405 = vdwg.mxu0
    %v406 = vmul.f32 %v400, %v400
    %v407 = vsel %vm59, %v406, 0.0
    %408 = vadd.xlane.f32.xlu0 %v407
    %v409 = vpop.xlane.xlu0 %408
    %v410 = vmax.f32 %v409, 1e-24
    %v411 = vrsqrt.pop %v410
    %v412 = vmul.f32 %v400, %v411
    %v413 = vmul.f32 %v403, %v403
    %v414 = vsel %vm59, %v413, 0.0
    %415 = vadd.xlane.f32.xlu0 %v414
    %v416 = vpop.xlane.xlu0 %415
    %v417 = vmax.f32 %v416, 1e-24
    %v418 = vrsqrt.pop %v417
    %v419 = vmul.f32 %v403, %v418
    %v420 = vpack.c.bf16 %v412, %v412
    %v421 = vpack.c.bf16 %v419, %v419
    %v423 = vsel %vm59, %v420, 0
    %v426 = vsel %vm59, %v421, 0
    %428 = vmatprep.subr.bf16.mxu0 0
    %429 = vmatpush1.bf16.xpose.msra.mxu0 0
    %430 = vmatprep.subr.bf16.mxu0 0
    %431 = vmatpush1.bf16.xpose.msra.mxu0 0
    %432 = vmatprep.subr.bf16.mxu0 0
    %433 = vmatpush1.bf16.xpose.msra.mxu0 0
    %434 = vmatprep.subr.bf16.mxu0 0
    %435 = vmatpush1.bf16.xpose.msra.mxu0 0
    %436 = vmatprep.subr.bf16.mxu0 0
    %437 = vmatpush1.bf16.xpose.msra.mxu0 0
    %438 = vmatprep.subr.bf16.mxu0 0
    %439 = vmatpush1.bf16.xpose.msra.mxu0 0
    %440 = vmatprep.subr.bf16.mxu0 0
    %441 = vmatpush1.bf16.xpose.msra.mxu0 0
    %442 = vmatprep.subr.bf16.mxu0 0
    %443 = vmatpush1.bf16.xpose.msra.mxu0 %v426
    %444 = vmatprep.subr.bf16.mxu0 0
    %445 = vmatpush2.bf16.xpose.msra.mxu0 0
    %446 = vmatprep.subr.bf16.mxu0 0
    %447 = vmatpush2.bf16.xpose.msra.mxu0 0
    %448 = vmatprep.subr.bf16.mxu0 0
    %449 = vmatpush2.bf16.xpose.msra.mxu0 0
    %450 = vmatprep.subr.bf16.mxu0 0
    %451 = vmatpush2.bf16.xpose.msra.mxu0 0
    %452 = vmatprep.subr.bf16.mxu0 0
    %453 = vmatpush2.bf16.xpose.msra.mxu0 0
    %454 = vmatprep.subr.bf16.mxu0 0
    %455 = vmatpush2.bf16.xpose.msra.mxu0 0
    %456 = vmatprep.subr.bf16.mxu0 0
    %457 = vmatpush2.bf16.xpose.msra.mxu0 0
    %458 = vmatprep.subr.bf16.mxu0 0
    %459 = vmatpush2.bf16.xpose.msra.mxu0 0
    %460 = vmatprep.mubr.bf16.mxu0 0
    %461 = vmatmul.mubr.bf16.gmra.mxu0 %v423
    %v462 = vpop.f32.mrf.mxu0
    %v463 = vadd.f32 0.0, %v462
    %v464 = vpop.f32.mrf.mxu0
    %v465 = vpop.f32.mrf.mxu0
    %v466 = vpop.f32.mrf.mxu0
    %467 = vdwg.mxu0
    %v468 = vmul.f32 %v463, 2.0
    %v469 = vmul.f32 %v468, 1.442695
    %v470 = vpow.pop %v469
    %v471 = vld [vmem:[%s8] sm:$0xff]
    %v472 = vsel %vm109, %v470, 0.0
    %473 = vadd.xlane.f32.xlu0 %v472
    %v474 = vpop.xlane.xlu0 %473
    %v475 = vlog2.pop %v474
    %v476 = vmul.f32 %v475, 0.6931472
    %v477 = vmul.f32 %v470, %v471
    %v478 = vsel %vm109, %v477, 0.0
    %479 = vadd.xlane.f32.xlu0 %v478
    %v480 = vpop.xlane.xlu0 %479
    %v481 = vlog2.pop %v480
    %v482 = vmul.f32 %v481, 0.6931472
    %v483 = vsub.f32 %v476, %v482
    %v484 = vrot.slane %v472, 4
    %v485 = vadd.f32 %v472, %v484
    %v486 = vrot.slane %v485, 2
    %v487 = vadd.f32 %v485, %v486
    %v488 = vrot.slane %v487, 1
    %v489 = vadd.f32 %v487, %v488
    %v490 = vlog2.pop %v489
    %v491 = vmul.f32 %v490, 0.6931472
    %492 = vxpose.xlu0.b32.start [1/16] %v471, 128
    %493 = vxpose.xlu0.b32.cont [2/16] 0.0, 128
    %494 = vxpose.xlu0.b32.cont [3/16] 0.0, 128
    %495 = vxpose.xlu0.b32.cont [4/16] 0.0, 128
    %496 = vxpose.xlu0.b32.cont [5/16] 0.0, 128
    %497 = vxpose.xlu0.b32.cont [6/16] 0.0, 128
    %498 = vxpose.xlu0.b32.cont [7/16] 0.0, 128
    %499 = vxpose.xlu0.b32.cont [8/16] 0.0, 128
    %500 = vxpose.xlu0.b32.cont [9/16] 0.0, 128
    %501 = vxpose.xlu0.b32.cont [10/16] 0.0, 128
    %502 = vxpose.xlu0.b32.cont [11/16] 0.0, 128
    %503 = vxpose.xlu0.b32.cont [12/16] 0.0, 128
    %504 = vxpose.xlu0.b32.cont [13/16] 0.0, 128
    %505 = vxpose.xlu0.b32.cont [14/16] 0.0, 128
    %506 = vxpose.xlu0.b32.cont [15/16] 0.0, 128
    %507 = vxpose.xlu0.b32.end [16/16] 0.0, 128
    %v508 = vpop.trf.xlu0
    %v509 = vpop.trf.xlu0
    %v510 = vpop.trf.xlu0
    %v511 = vpop.trf.xlu0
    %v512 = vpop.trf.xlu0
    %v513 = vpop.trf.xlu0
    %v514 = vpop.trf.xlu0
    %v515 = vpop.trf.xlu0
    %v516 = vpop.trf.xlu0
    %v517 = vpop.trf.xlu0
    %v518 = vpop.trf.xlu0
    %v519 = vpop.trf.xlu0
    %v520 = vpop.trf.xlu0
    %v521 = vpop.trf.xlu0
    %v522 = vpop.trf.xlu0
    %v523 = vpop.trf.xlu0
    %v524 = vmul.f32 %v470, %v508
    %v525 = vsel %vm109, %v524, 0.0
    %v526 = vrot.slane %v525, 4
    %v527 = vadd.f32 %v525, %v526
    %v528 = vrot.slane %v527, 2
    %v529 = vadd.f32 %v527, %v528
    %v530 = vrot.slane %v529, 1
    %v531 = vadd.f32 %v529, %v530
    %v532 = vlog2.pop %v531
    %v533 = vmul.f32 %v532, 0.6931472
    %v534 = vsub.f32 %v491, %v533
    %v535 = vrot.slane %v483, 4
    %v536 = vadd.f32 %v483, %v535
    %v537 = vrot.slane %v536, 2
    %v538 = vadd.f32 %v536, %v537
    %v539 = vrot.slane %v538, 1
    %v540 = vadd.f32 %v538, %v539
    %v541 = vsel %vm109, %v534, 0.0
    %542 = vadd.xlane.f32.xlu0 %v541
    %v543 = vpop.xlane.xlu0 %542
    %v544 = vadd.f32 %v540, %v543
    %v545 = vmul.f32 %v544, 0.125
    %vm546 = vcmask 0
    %547 = vst.msk [vmem:[#allocation2] sm:$0x1] %vm546, %v545
    %v548 = vunpack.c.l.bf16 %v42
    %v549 = vsel %vm109, %v548, 0.0
    %550 = vadd.xlane.f32.xlu0 %v549
    %v551 = vpop.xlane.xlu0 %550
    %v552 = vunpack.c.l.bf16 %v43
    %v553 = vsel %vm109, %v552, 0.0
    %554 = vadd.xlane.f32.xlu0 %v553
    %v555 = vpop.xlane.xlu0 %554
    %vm556 = vcmp.gt.f32.partialorder %v551, 0.0
    %v557 = vrsqrt.pop %v551
    %v558 = vsel %vm556, %v557, 0.0
    %vm559 = vcmp.gt.f32.partialorder %v555, 0.0
    %v560 = vrsqrt.pop %v555
    %v561 = vsel %vm559, %v560, 0.0
    %v562 = vmul.f32 %v558, %v152
    %v563 = vpack.c.bf16 %v562, %v562
    %v565 = vsel %vm113, %v563, 0
    %567 = vmatprep.subr.bf16.mxu0 0
    %568 = vmatpush1.bf16.msra.mxu0 0
    %569 = vmatprep.subr.bf16.mxu0 0
    %570 = vmatpush1.bf16.msra.mxu0 0
    %571 = vmatprep.subr.bf16.mxu0 0
    %572 = vmatpush1.bf16.msra.mxu0 0
    %573 = vmatprep.subr.bf16.mxu0 0
    %574 = vmatpush1.bf16.msra.mxu0 0
    %575 = vmatprep.subr.bf16.mxu0 0
    %576 = vmatpush1.bf16.msra.mxu0 0
    %577 = vmatprep.subr.bf16.mxu0 0
    %578 = vmatpush1.bf16.msra.mxu0 0
    %579 = vmatprep.subr.bf16.mxu0 0
    %580 = vmatpush1.bf16.msra.mxu0 0
    %581 = vmatprep.subr.bf16.mxu0 0
    %582 = vmatpush1.bf16.msra.mxu0 %v565
    %583 = vmatprep.subr.bf16.mxu0 0
    %584 = vmatpush2.bf16.msra.mxu0 0
    %585 = vmatprep.subr.bf16.mxu0 0
    %586 = vmatpush2.bf16.msra.mxu0 0
    %587 = vmatprep.subr.bf16.mxu0 0
    %588 = vmatpush2.bf16.msra.mxu0 0
    %589 = vmatprep.subr.bf16.mxu0 0
    %590 = vmatpush2.bf16.msra.mxu0 0
    %591 = vmatprep.subr.bf16.mxu0 0
    %592 = vmatpush2.bf16.msra.mxu0 0
    %593 = vmatprep.subr.bf16.mxu0 0
    %594 = vmatpush2.bf16.msra.mxu0 0
    %595 = vmatprep.subr.bf16.mxu0 0
    %596 = vmatpush2.bf16.msra.mxu0 0
    %597 = vmatprep.subr.bf16.mxu0 0
    %598 = vmatpush2.bf16.msra.mxu0 0
    %599 = vmatprep.mubr.bf16.mxu0 0
    %600 = vmatmul.mubr.bf16.gmra.mxu0 %v111
    %v601 = vpop.f32.mrf.mxu0
    %v602 = vadd.f32 0.0, %v601
    %v603 = vpop.f32.mrf.mxu0
    %v604 = vpop.f32.mrf.mxu0
    %v605 = vpop.f32.mrf.mxu0
    %606 = vdwg.mxu0
    %v607 = vmul.f32 %v558, %v602
    %v608 = vsub.f32 0.0, %v607
    %v609 = vmul.f32 %v561, %v200
    %v610 = vpack.c.bf16 %v609, %v609
    %v612 = vsel %vm113, %v610, 0
    %614 = vmatprep.subr.bf16.mxu0 0
    %615 = vmatpush1.bf16.msra.mxu0 0
    %616 = vmatprep.subr.bf16.mxu0 0
    %617 = vmatpush1.bf16.msra.mxu0 0
    %618 = vmatprep.subr.bf16.mxu0 0
    %619 = vmatpush1.bf16.msra.mxu0 0
    %620 = vmatprep.subr.bf16.mxu0 0
    %621 = vmatpush1.bf16.msra.mxu0 0
    %622 = vmatprep.subr.bf16.mxu0 0
    %623 = vmatpush1.bf16.msra.mxu0 0
    %624 = vmatprep.subr.bf16.mxu0 0
    %625 = vmatpush1.bf16.msra.mxu0 0
    %626 = vmatprep.subr.bf16.mxu0 0
    %627 = vmatpush1.bf16.msra.mxu0 0
    %628 = vmatprep.subr.bf16.mxu0 0
    %629 = vmatpush1.bf16.msra.mxu0 %v612
    %630 = vmatprep.subr.bf16.mxu0 0
    %631 = vmatpush2.bf16.msra.mxu0 0
    %632 = vmatprep.subr.bf16.mxu0 0
    %633 = vmatpush2.bf16.msra.mxu0 0
    %634 = vmatprep.subr.bf16.mxu0 0
    %635 = vmatpush2.bf16.msra.mxu0 0
    %636 = vmatprep.subr.bf16.mxu0 0
    %637 = vmatpush2.bf16.msra.mxu0 0
    %638 = vmatprep.subr.bf16.mxu0 0
    %639 = vmatpush2.bf16.msra.mxu0 0
    %640 = vmatprep.subr.bf16.mxu0 0
    %641 = vmatpush2.bf16.msra.mxu0 0
    %642 = vmatprep.subr.bf16.mxu0 0
    %643 = vmatpush2.bf16.msra.mxu0 0
    %644 = vmatprep.subr.bf16.mxu0 0
    %645 = vmatpush2.bf16.msra.mxu0 0
    %646 = vmatprep.mubr.bf16.mxu0 0
    %647 = vmatmul.mubr.bf16.gmra.mxu0 %v160
    %v648 = vpop.f32.mrf.mxu0
    %v649 = vadd.f32 0.0, %v648
    %v650 = vpop.f32.mrf.mxu0
    %v651 = vpop.f32.mrf.mxu0
    %v652 = vpop.f32.mrf.mxu0
    %653 = vdwg.mxu0
    %v654 = vmul.f32 %v561, %v649
    %v655 = vsub.f32 0.0, %v654
    %658 = vrot.lane.b32.xlu0 %v608, 32
    %v659 = vpop.permute.xlu0 %658
    %660 = vrot.lane.b32.xlu0 %v655, 32
    %v661 = vpop.permute.xlu0 %660
    %v664 = vsel %vm226, %v152, %v659
    %v665 = vsel %vm226, %v200, %v661
    %v666 = vpack.c.bf16 %v665, %v664
    %v667 = vld [vmem:[%s6] sm:$0xf]
    %v668 = vld [vmem:[%s6 + $0x4] sm:$0xf]
    %v669 = vld [vmem:[%s6 + $0x8] sm:$0xf]
    %v670 = vld [vmem:[%s6 + $0xc] sm:$0xf]
    %v671 = vld [vmem:[%s6 + $0x10] sm:$0xf]
    %v672 = vld [vmem:[%s6 + $0x14] sm:$0xf]
    %v673 = vld [vmem:[%s6 + $0x18] sm:$0xf]
    %v674 = vld [vmem:[%s6 + $0x1c] sm:$0xf]
    %v675 = vlaneseq
    %v676 = vshrl.u32 %v675, 7
    %v677 = vsub.s32 0, %v676
    %v678 = vrot.slane %v41, %v677
    %v687 = vunpack.c.l.b16 %v667
    %v688 = vunpack.c.l.b16 %v668
    %v689 = vunpack.c.l.b16 %v669
    %v690 = vunpack.c.l.b16 %v670
    %v691 = vunpack.c.l.b16 %v671
    %v692 = vunpack.c.l.b16 %v672
    %v693 = vunpack.c.l.b16 %v673
    %v694 = vunpack.c.l.b16 %v674
    %v695 = vpack.c.b16 %v688, %v687
    %v696 = vpack.c.b16 %v690, %v689
    %v697 = vpack.c.b16 %v692, %v691
    %v698 = vpack.c.b16 %v694, %v693
    %vm703 = vcmask 523264
    %v705 = vsel %vm703, %v666, 0
    %707 = vmatprep.subr.bf16.mxu0 0
    %708 = vmatpush1.bf16.msra.mxu0 0
    %709 = vmatprep.subr.bf16.mxu0 0
    %710 = vmatpush1.bf16.msra.mxu0 0
    %711 = vmatprep.subr.bf16.mxu0 0
    %712 = vmatpush1.bf16.msra.mxu0 0
    %713 = vmatprep.subr.bf16.mxu0 0
    %714 = vmatpush1.bf16.msra.mxu0 0
    %715 = vmatprep.subr.bf16.mxu0 0
    %716 = vmatpush1.bf16.msra.mxu0 %v698
    %717 = vmatprep.subr.bf16.mxu0 0
    %718 = vmatpush1.bf16.msra.mxu0 %v697
    %719 = vmatprep.subr.bf16.mxu0 0
    %720 = vmatpush1.bf16.msra.mxu0 %v696
    %721 = vmatprep.subr.bf16.mxu0 0
    %722 = vmatpush1.bf16.msra.mxu0 %v695
    %723 = vmatprep.subr.bf16.mxu0 0
    %724 = vmatpush2.bf16.msra.mxu0 0
    %725 = vmatprep.subr.bf16.mxu0 0
    %726 = vmatpush2.bf16.msra.mxu0 0
    %727 = vmatprep.subr.bf16.mxu0 0
    %728 = vmatpush2.bf16.msra.mxu0 0
    %729 = vmatprep.subr.bf16.mxu0 0
    %730 = vmatpush2.bf16.msra.mxu0 0
    %731 = vmatprep.subr.bf16.mxu0 0
    %732 = vmatpush2.bf16.msra.mxu0 0
    %733 = vmatprep.subr.bf16.mxu0 0
    %734 = vmatpush2.bf16.msra.mxu0 0
    %735 = vmatprep.subr.bf16.mxu0 0
    %736 = vmatpush2.bf16.msra.mxu0 0
    %737 = vmatprep.subr.bf16.mxu0 0
    %738 = vmatpush2.bf16.msra.mxu0 0
    %739 = vmatprep.mubr.bf16.mxu0 0
    %740 = vmatmul.mubr.bf16.gmra.mxu0 %v705
    %v741 = vpop.f32.mrf.mxu0
    %v742 = vadd.f32 %v678, %v741
    %v743 = vpop.f32.mrf.mxu0
    %v744 = vpop.f32.mrf.mxu0
    %v745 = vadd.f32 %v678, %v744
    %v746 = vpop.f32.mrf.mxu0
    %747 = vdwg.mxu0
    %vm748 = vcmask 15360
    %749 = vst.msk [vmem:[%s9] sm:$0xff] %vm748, %v742
    %750 = vst.msk [vmem:[%s9 + $0x8] sm:$0xff] %vm748, %v745
    // Predicated region
    $region38: #{dgcl_forward.1} parent=1 // pred_check
      _
    $region39: #{dgcl_forward.1} parent=1 // pred_check_branch
      %752 = sbr.rel (0) target = $region41
    $region40: #{dgcl_forward.1} parent=1 // pred_region
      _
    $region41: #{dgcl_forward.1} parent=1 // pred_fallthru
      _
    // Predicated region
    $region42: #{dgcl_forward.1} parent=1 // pred_check
      _
    $region43: #{dgcl_forward.1} parent=1 // pred_check_branch
      %754 = sbr.rel (0) target = $region45
    $region44: #{dgcl_forward.1} parent=1 // pred_region
      %s756 = ssub.s32 16, 16
      %757 = vsyncadd [#allocation3], %s756
      %s759 = sshll.u32 [#allocation2], 4
      %s760 = int_to_ptr.vmem [resolvable:$true] %s759
      %762 = dma.vmem_to_hbm [thread:$0]  %s760, 16, %s10, [#allocation3]
    $region45: #{dgcl_forward.1} parent=1 // pred_fallthru
      _
    // Predicated region
    $region46: #{dgcl_forward.1} parent=1 // pred_check
      _
    $region47: #{dgcl_forward.1} parent=1 // pred_check_branch
      %764 = sbr.rel (0) target = $region49
    $region48: #{dgcl_forward.1} parent=1 // pred_region
      _
    $region49: #{dgcl_forward.1} parent=1 // pred_fallthru
      _
    // Predicated region
    $region50: #{dgcl_forward.1} parent=1 // pred_check
      _
    $region51: #{dgcl_forward.1} parent=1 // pred_check_branch
      %766 = sbr.rel (0) target = $region53
    $region52: #{dgcl_forward.1} parent=1 // pred_region
      %767 = dma.done [#allocation3], 16
    $region53: #{dgcl_forward.1} parent=1 // pred_fallthru
      _
    %768 = vsyncpa [#allocation3], 1

</llo_original>
